<compile_context>
chip_gen: v7x
topology: tpu7x:2x2x1
jax: 0.10.0
libtpu: 0.0.40
codegen_flags: <defaults>
</compile_context>

<pallas_src>
import numpy as np
import jax
import jax.numpy as jnp
from jax.experimental import pallas as pl
from jax.experimental.pallas import tpu as pltpu

_LANES = 128


def _round_up(x, m):
    return ((x + m - 1) // m) * m


def _policy_mlp_kernel(inp_ref, z_ref, w1a_ref, w1b_ref, b1_ref,
                       w2_ref, b2_ref, w3_ref, b3_ref, o_ref):
    """Fused 3-layer MLP with the input concat folded into a split first matmul.

    h1 = relu(inp @ W1a + z @ W1b + b1)
    h2 = relu(h1 @ W2 + b2)
    o  = h2 @ W3 + b3            (W3/b3 zero-padded to 128 lanes -> lane-dense bf16 store)
    inp/z arrive as f32 tiles and are cast to bf16 on the VPU right before the dots.
    All dots: bf16 inputs, f32 accumulation. Bias-add / ReLU stay f32.
    """
    inp_bf = inp_ref[...].astype(jnp.bfloat16)
    z_bf = z_ref[...].astype(jnp.bfloat16)

    h1 = (jnp.dot(inp_bf, w1a_ref[...], preferred_element_type=jnp.float32)
          + jnp.dot(z_bf, w1b_ref[...], preferred_element_type=jnp.float32)
          + b1_ref[...])
    h1 = jnp.maximum(h1, 0.0)

    h2 = jnp.dot(h1.astype(w2_ref.dtype), w2_ref[...],
                 preferred_element_type=jnp.float32) + b2_ref[...]
    h2 = jnp.maximum(h2, 0.0)

    out = jnp.dot(h2.astype(w3_ref.dtype), w3_ref[...],
                  preferred_element_type=jnp.float32) + b3_ref[...]
    o_ref[...] = out.astype(o_ref.dtype)


def policy_net_forward(inp, z, params, act_size, *, block_b=4096, return_padded=False):
    """PolicyNet.forward (Discrete path): logits = MLP(concat(inp, z)).

    Returns bf16 logits [B, act_size] (or the padded [B, act_pad] slab if
    return_padded=True; padded columns are exactly 0.0, not -inf).
    """
    w1a, w1b, b1, w2, b2, w3, b3 = params
    B = inp.shape[0]
    obs_size = inp.shape[1]
    z_dim = z.shape[1]
    hid = w2.shape[0]
    act_pad = w3.shape[1]          # head padded to a multiple of 128 lanes
    in_size = obs_size + z_dim

    # Batch tile:
    #   * multiple of 16 (bf16 native sublane tile),
    #   * at most block_b (default 4096 -> ~2.7 MiB double-buffered, tiny vs any
    #     generation's VMEM; no vmem_limit_bytes override needed, even on v7x),
    #   * ~half the batch when possible so the grid has >=2 parallel steps and
    #     both of v7x's TensorCores get work,
    #   * clamped to the (8-padded) batch so tiny B still yields one valid block.
    bm_cap = max(16, _round_up(block_b, 16))
    bm = min(bm_cap,
             max(16, _round_up(pl.cdiv(B, 2), 16)),
             _round_up(B, 8))
    grid = (pl.cdiv(B, bm),)

    def act_spec(f):
        return pl.BlockSpec((bm, f), lambda i: (i, 0))

    def resident_spec(arr):
        return pl.BlockSpec(arr.shape, lambda i: (0, 0))   # weights/biases DMA'd once

    flops = 2 * B * (in_size * hid + hid * hid + hid * act_pad)
    bytes_accessed = int(
        inp.size * inp.dtype.itemsize + z.size * z.dtype.itemsize
        + B * act_pad * 2                                   # bf16 output slab
        + sum(int(np.prod(p.shape)) * p.dtype.itemsize for p in params))

    out = pl.pallas_call(
        _policy_mlp_kernel,
        out_shape=jax.ShapeDtypeStruct((B, act_pad), jnp.bfloat16),
        grid=grid,
        in_specs=[
            act_spec(obs_size), act_spec(z_dim),
            resident_spec(w1a), resident_spec(w1b), resident_spec(b1),
            resident_spec(w2), resident_spec(b2),
            resident_spec(w3), resident_spec(b3),
        ],
        out_specs=pl.BlockSpec((bm, act_pad), lambda i: (i, 0)),
        compiler_params=pltpu.CompilerParams(
            dimension_semantics=("parallel",)),
        cost_estimate=pl.CostEstimate(
            flops=flops, transcendentals=0, bytes_accessed=bytes_accessed),
    )(inp, z, w1a, w1b, b1, w2, b2, w3, b3)

    if return_padded:
        # Caller consumes the lane-dense [B, act_pad] slab directly (padded columns
        # are 0.0 logits, not -inf) and avoids the extra slice pass entirely.
        return out
    return out[:, :act_size]


def init_params(key, obs_size, z_dim, hidden_size, act_size, head_std=0.01):
    """Synthetic init mirroring FCLayers(obs+z, hidden, 2, act, head_std=0.01).

    Weights stored [in, out] in bf16 (W1 pre-split at obs_size for the fused concat,
    head zero-padded to 128 lanes); biases kept f32 with shape (1, out).
    """
    in_size = obs_size + z_dim
    act_pad = _round_up(act_size, _LANES)
    k1, k2, k3 = jax.random.split(key, 3)

    def uniform_w(k, fan_in, fan_out):
        bound = 1.0 / np.sqrt(fan_in)
        return jax.random.uniform(k, (fan_in, fan_out), jnp.float32, -bound, bound)

    w1 = uniform_w(k1, in_size, hidden_size)
    w2 = uniform_w(k2, hidden_size, hidden_size)
    w3 = jax.random.normal(k3, (hidden_size, act_size), jnp.float32) * head_std

    w1a = w1[:obs_size].astype(jnp.bfloat16)       # inp slice of the first layer
    w1b = w1[obs_size:].astype(jnp.bfloat16)       # z   slice of the first layer
    b1 = jnp.zeros((1, hidden_size), jnp.float32)
    b2 = jnp.zeros((1, hidden_size), jnp.float32)
    w3p = jnp.zeros((hidden_size, act_pad), jnp.float32).at[:, :act_size].set(w3)
    b3p = jnp.zeros((1, act_pad), jnp.float32)

    return (w1a, w1b, b1, w2.astype(jnp.bfloat16), b2, w3p.astype(jnp.bfloat16), b3p)


if __name__ == "__main__":
    # Small shapes consistent with the module:
    #   obs_size=16 (flattened Box obs), z_dim=4 (config.z_dim), hidden_size=64
    #   (default), num_hidden=2, Discrete(5) action space -> act_size=5, batch=8.
    B, OBS, ZDIM, HID, ACT = 8, 16, 4, 64, 5

    key = jax.random.PRNGKey(0)
    k_inp, k_z, k_par = jax.random.split(key, 3)

    inp = jax.random.normal(k_inp, (B, OBS), jnp.float32)
    z = jax.random.normal(k_z, (B, ZDIM), jnp.float32)
    params = init_params(k_par, OBS, ZDIM, HID, ACT, head_std=0.01)

    logits = jax.block_until_ready(policy_net_forward(inp, z, params, ACT))

    # Pure-JAX reference with matching bf16-in / f32-accumulate / bf16-out numerics.
    w1a, w1b, b1, w2, b2, w3, b3 = params
    x = jnp.concatenate([inp, z], axis=-1).astype(jnp.bfloat16)
    w1_full = jnp.concatenate([w1a, w1b], axis=0)
    h = jnp.maximum(jnp.dot(x, w1_full, preferred_element_type=jnp.float32) + b1, 0.0)
    h = jnp.maximum(jnp.dot(h.astype(jnp.bfloat16), w2,
                            preferred_element_type=jnp.float32) + b2, 0.0)
    ref = jnp.dot(h.astype(jnp.bfloat16), w3,
                  preferred_element_type=jnp.float32) + b3
    ref = ref[:, :ACT]

    np.testing.assert_allclose(np.asarray(logits, dtype=np.float32),
                               np.asarray(ref, dtype=np.float32),
                               rtol=2e-2, atol=2e-2)
    assert logits.shape == (B, ACT)
    # TODO(synk): Box action-space branch returns an extra constant nn.Parameter logstd
    # (pure parameter pass-through, no kernel compute); only the Discrete path is exercised.
    print("KERNEL_OK")
</pallas_src>

<mosaic_0001>
module attributes {stable_mosaic.version = 11 : i64} {
  func.func @_policy_mlp_kernel(%arg0: i32, %arg1: memref<8x16xf32, #tpu.memory_space<vmem>>, %arg2: memref<8x4xf32, #tpu.memory_space<vmem>>, %arg3: memref<16x64xbf16, #tpu.memory_space<vmem>>, %arg4: memref<4x64xbf16, #tpu.memory_space<vmem>>, %arg5: memref<1x64xf32, #tpu.memory_space<vmem>>, %arg6: memref<64x64xbf16, #tpu.memory_space<vmem>>, %arg7: memref<1x64xf32, #tpu.memory_space<vmem>>, %arg8: memref<64x128xbf16, #tpu.memory_space<vmem>>, %arg9: memref<1x128xf32, #tpu.memory_space<vmem>>, %arg10: memref<8x128xbf16, #tpu.memory_space<vmem>>) attributes {dimension_semantics = [#tpu.dimension_semantics<parallel>], iteration_bounds = array<i64: 1>, scalar_prefetch = 0 : i64, scratch_operands = 0 : i64, tpu.core_type = #tpu.core_type<tc>, window_params = [{transform_indices = @transform_0, window_bounds = array<i64: 8, 16>}, {transform_indices = @transform_1, window_bounds = array<i64: 8, 4>}, {pipeline_mode = #tpu.pipeline_mode<synchronous>, transform_indices = @transform_2, window_bounds = array<i64: 16, 64>}, {pipeline_mode = #tpu.pipeline_mode<synchronous>, transform_indices = @transform_3, window_bounds = array<i64: 4, 64>}, {pipeline_mode = #tpu.pipeline_mode<synchronous>, transform_indices = @transform_4, window_bounds = array<i64: 1, 64>}, {pipeline_mode = #tpu.pipeline_mode<synchronous>, transform_indices = @transform_5, window_bounds = array<i64: 64, 64>}, {pipeline_mode = #tpu.pipeline_mode<synchronous>, transform_indices = @transform_6, window_bounds = array<i64: 1, 64>}, {pipeline_mode = #tpu.pipeline_mode<synchronous>, transform_indices = @transform_7, window_bounds = array<i64: 64, 128>}, {pipeline_mode = #tpu.pipeline_mode<synchronous>, transform_indices = @transform_8, window_bounds = array<i64: 1, 128>}, {transform_indices = @transform_9, window_bounds = array<i64: 8, 128>}]} {
    %c0 = arith.constant 0 : index
    %c0_0 = arith.constant 0 : index
    %0 = vector.load %arg1[%c0, %c0_0] : memref<8x16xf32, #tpu.memory_space<vmem>>, vector<8x16xf32>
    %1 = arith.truncf %0 : vector<8x16xf32> to vector<8x16xbf16>
    %c0_1 = arith.constant 0 : index
    %c0_2 = arith.constant 0 : index
    %2 = vector.load %arg2[%c0_1, %c0_2] : memref<8x4xf32, #tpu.memory_space<vmem>>, vector<8x4xf32>
    %3 = arith.truncf %2 : vector<8x4xf32> to vector<8x4xbf16>
    %c0_3 = arith.constant 0 : index
    %c0_4 = arith.constant 0 : index
    %4 = vector.load %arg3[%c0_3, %c0_4] : memref<16x64xbf16, #tpu.memory_space<vmem>>, vector<16x64xbf16>
    %cst = arith.constant dense<0.000000e+00> : vector<8x64xf32>
    %5 = tpu.matmul %1, %4, %cst {dimension_numbers = #tpu.dot_dimension_numbers<[1], [0], [0], [1], [0, 0, 1, 1], [], []>} : vector<8x16xbf16>, vector<16x64xbf16>, vector<8x64xf32> -> vector<8x64xf32>
    %c0_5 = arith.constant 0 : index
    %c0_6 = arith.constant 0 : index
    %6 = vector.load %arg4[%c0_5, %c0_6] : memref<4x64xbf16, #tpu.memory_space<vmem>>, vector<4x64xbf16>
    %cst_7 = arith.constant dense<0.000000e+00> : vector<8x64xf32>
    %7 = tpu.matmul %3, %6, %cst_7 {dimension_numbers = #tpu.dot_dimension_numbers<[1], [0], [0], [1], [0, 0, 1, 1], [], []>} : vector<8x4xbf16>, vector<4x64xbf16>, vector<8x64xf32> -> vector<8x64xf32>
    %8 = arith.addf %5, %7 : vector<8x64xf32>
    %c0_8 = arith.constant 0 : index
    %c0_9 = arith.constant 0 : index
    %9 = vector.load %arg5[%c0_8, %c0_9] : memref<1x64xf32, #tpu.memory_space<vmem>>, vector<1x64xf32>
    %10 = vector.broadcast %9 : vector<1x64xf32> to vector<8x64xf32>
    %11 = arith.addf %8, %10 : vector<8x64xf32>
    %cst_10 = arith.constant 0.000000e+00 : f32
    %12 = vector.broadcast %cst_10 : f32 to vector<8x64xf32>
    %13 = arith.maximumf %11, %12 : vector<8x64xf32>
    %14 = arith.truncf %13 : vector<8x64xf32> to vector<8x64xbf16>
    %c0_11 = arith.constant 0 : index
    %c0_12 = arith.constant 0 : index
    %15 = vector.load %arg6[%c0_11, %c0_12] : memref<64x64xbf16, #tpu.memory_space<vmem>>, vector<64x64xbf16>
    %cst_13 = arith.constant dense<0.000000e+00> : vector<8x64xf32>
    %16 = tpu.matmul %14, %15, %cst_13 {dimension_numbers = #tpu.dot_dimension_numbers<[1], [0], [0], [1], [0, 0, 1, 1], [], []>} : vector<8x64xbf16>, vector<64x64xbf16>, vector<8x64xf32> -> vector<8x64xf32>
    %c0_14 = arith.constant 0 : index
    %c0_15 = arith.constant 0 : index
    %17 = vector.load %arg7[%c0_14, %c0_15] : memref<1x64xf32, #tpu.memory_space<vmem>>, vector<1x64xf32>
    %18 = vector.broadcast %17 : vector<1x64xf32> to vector<8x64xf32>
    %19 = arith.addf %16, %18 : vector<8x64xf32>
    %cst_16 = arith.constant 0.000000e+00 : f32
    %20 = vector.broadcast %cst_16 : f32 to vector<8x64xf32>
    %21 = arith.maximumf %19, %20 : vector<8x64xf32>
    %22 = arith.truncf %21 : vector<8x64xf32> to vector<8x64xbf16>
    %c0_17 = arith.constant 0 : index
    %c0_18 = arith.constant 0 : index
    %23 = vector.load %arg8[%c0_17, %c0_18] : memref<64x128xbf16, #tpu.memory_space<vmem>>, vector<64x128xbf16>
    %cst_19 = arith.constant dense<0.000000e+00> : vector<8x128xf32>
    %24 = tpu.matmul %22, %23, %cst_19 {dimension_numbers = #tpu.dot_dimension_numbers<[1], [0], [0], [1], [0, 0, 1, 1], [], []>} : vector<8x64xbf16>, vector<64x128xbf16>, vector<8x128xf32> -> vector<8x128xf32>
    %c0_20 = arith.constant 0 : index
    %c0_21 = arith.constant 0 : index
    %25 = vector.load %arg9[%c0_20, %c0_21] : memref<1x128xf32, #tpu.memory_space<vmem>>, vector<1x128xf32>
    %26 = vector.broadcast %25 : vector<1x128xf32> to vector<8x128xf32>
    %27 = arith.addf %24, %26 : vector<8x128xf32>
    %28 = arith.truncf %27 : vector<8x128xf32> to vector<8x128xbf16>
    %c0_22 = arith.constant 0 : index
    %c0_23 = arith.constant 0 : index
    %29 = vector.load %arg10[%c0_22, %c0_23] : memref<8x128xbf16, #tpu.memory_space<vmem>>, vector<8x128xbf16>
    tpu.vector_store %arg10[%c0_22, %c0_23], %28 {strides = array<i32>} : memref<8x128xbf16, #tpu.memory_space<vmem>>, vector<8x128xbf16>,
    return
  }
  func.func @transform_0(%arg0: i32) -> (i32, i32) {
    %c0_i32 = arith.constant 0 : i32
    %c0_i32_0 = arith.constant 0 : i32
    return %arg0, %c0_i32 : i32, i32
  }
  func.func @transform_1(%arg0: i32) -> (i32, i32) {
    %c0_i32 = arith.constant 0 : i32
    %c0_i32_0 = arith.constant 0 : i32
    return %arg0, %c0_i32 : i32, i32
  }
  func.func @transform_2(%arg0: i32) -> (i32, i32) {
    %c0_i32 = arith.constant 0 : i32
    %c0_i32_0 = arith.constant 0 : i32
    %c0_i32_1 = arith.constant 0 : i32
    return %c0_i32, %c0_i32_0 : i32, i32
  }
  func.func @transform_3(%arg0: i32) -> (i32, i32) {
    %c0_i32 = arith.constant 0 : i32
    %c0_i32_0 = arith.constant 0 : i32
    %c0_i32_1 = arith.constant 0 : i32
    return %c0_i32, %c0_i32_0 : i32, i32
  }
  func.func @transform_4(%arg0: i32) -> (i32, i32) {
    %c0_i32 = arith.constant 0 : i32
    %c0_i32_0 = arith.constant 0 : i32
    %c0_i32_1 = arith.constant 0 : i32
    return %c0_i32, %c0_i32_0 : i32, i32
  }
  func.func @transform_5(%arg0: i32) -> (i32, i32) {
    %c0_i32 = arith.constant 0 : i32
    %c0_i32_0 = arith.constant 0 : i32
    %c0_i32_1 = arith.constant 0 : i32
    return %c0_i32, %c0_i32_0 : i32, i32
  }
  func.func @transform_6(%arg0: i32) -> (i32, i32) {
    %c0_i32 = arith.constant 0 : i32
    %c0_i32_0 = arith.constant 0 : i32
    %c0_i32_1 = arith.constant 0 : i32
    return %c0_i32, %c0_i32_0 : i32, i32
  }
  func.func @transform_7(%arg0: i32) -> (i32, i32) {
    %c0_i32 = arith.constant 0 : i32
    %c0_i32_0 = arith.constant 0 : i32
    %c0_i32_1 = arith.constant 0 : i32
    return %c0_i32, %c0_i32_0 : i32, i32
  }
  func.func @transform_8(%arg0: i32) -> (i32, i32) {
    %c0_i32 = arith.constant 0 : i32
    %c0_i32_0 = arith.constant 0 : i32
    %c0_i32_1 = arith.constant 0 : i32
    return %c0_i32, %c0_i32_0 : i32, i32
  }
  func.func @transform_9(%arg0: i32) -> (i32, i32) {
    %c0_i32 = arith.constant 0 : i32
    %c0_i32_0 = arith.constant 0 : i32
    return %arg0, %c0_i32 : i32, i32
  }
}

</mosaic_0001>

<llo_original>
// kernel: tpu_custom_call.1
$region0: #{tpu_custom_call.1}
  #allocation0 [shape = 'u32[]', space=smem, size = 0x4, offset = 0x4, fixed_abs, tag = 'smem constant byte address 0x4 - core index']
  #allocation1 [shape = 'u32[144,128]{1,0:T(1,128)}', space=vmem, size = 0x12000, scoped, tag = 'internal scratch']
  %s0 = inlined_call_operand.hbm [shape: f32[8,16], index: 0, kind: input, shape index: {}]
  %s1 = inlined_call_operand.vmem [shape: f32[8,4], index: 1, kind: input, shape index: {}]
  %s2 = inlined_call_operand.hbm [shape: bf16[16,64], index: 2, kind: input, shape index: {}]
  %s3 = inlined_call_operand.vmem [shape: bf16[4,64], index: 3, kind: input, shape index: {}]
  %s4 = inlined_call_operand.vmem [shape: f32[1,64], index: 4, kind: input, shape index: {}]
  %s5 = inlined_call_operand.hbm [shape: bf16[64,64], index: 5, kind: input, shape index: {}]
  %s6 = inlined_call_operand.vmem [shape: f32[1,64], index: 6, kind: input, shape index: {}]
  %s7 = inlined_call_operand.vmem [shape: bf16[64,128], index: 7, kind: input, shape index: {}]
  %s8 = inlined_call_operand.vmem [shape: f32[1,128], index: 8, kind: input, shape index: {}]
  %s9 = inlined_call_operand.hbm [shape: bf16[8,128], index: 9, kind: output, shape index: {}]
  %s10 = sld [smem:[#allocation0]]
  $region58: #{tpu_custom_call.1} parent=0
    _
  %s12 = ssub.s32 1, %s10
  %s13 = scalar_select 0, %s12, %s10
  $region1: #{tpu_custom_call.1} parent=0
    #allocation2 [shape = 'u8[4096]{0}', space=vmem, size = 0x1000, scoped, tag = 'input window, operand 0, single buffered']
    #allocation3 [shape = 's32[1]{0}', space=sflag, size = 0x4, scoped, tag = 'scoped memory for tpu_custom_call.1']
    #allocation4 [shape = 's32[1]{0}', space=sflag, size = 0x4, scoped, tag = 'scoped memory for tpu_custom_call.1']
    #allocation5 [shape = 'u8[4096]{0}', space=vmem, size = 0x1000, scoped, tag = 'input window, operand 2, single buffered']
    #allocation6 [shape = 's32[1]{0}', space=sflag, size = 0x4, scoped, tag = 'scoped memory for tpu_custom_call.1']
    #allocation7 [shape = 'u8[16384]{0}', space=vmem, size = 0x4000, scoped, tag = 'input window, operand 5, single buffered']
    #allocation8 [shape = 'u8[2048]{0}', space=vmem, size = 0x800, scoped, tag = 'output window, operand 0, single buffered']
    %14 = vsyncpa [#allocation3], 0
    %15 = vsyncpa [#allocation6], 0
    %16 = vsyncpa [#allocation4], 0
    // Predicated region
    $region2: #{tpu_custom_call.1} parent=1 // pred_check
      _
    $region3: #{tpu_custom_call.1} parent=1 // pred_check_branch
      %18 = sbr.rel (0) target = $region5
    $region4: #{tpu_custom_call.1} parent=1 // pred_region
      %s20 = ssub.s32 128, 128
      %21 = vsyncadd [#allocation3], %s20
      %s23 = sshll.u32 [#allocation2], 4
      %s24 = int_to_ptr.vmem [resolvable:$true] %s23
      %26 = dma.hbm_to_vmem [thread:$0]  %s0, 128, %s24, [#allocation3]
    $region5: #{tpu_custom_call.1} parent=1 // pred_fallthru
      _
    // Predicated region
    $region6: #{tpu_custom_call.1} parent=1 // pred_check
      _
    $region7: #{tpu_custom_call.1} parent=1 // pred_check_branch
      %28 = sbr.rel (0) target = $region9
    $region8: #{tpu_custom_call.1} parent=1 // pred_region
      _
    $region9: #{tpu_custom_call.1} parent=1 // pred_fallthru
      _
    // Predicated region
    $region10: #{tpu_custom_call.1} parent=1 // pred_check
      _
    $region11: #{tpu_custom_call.1} parent=1 // pred_check_branch
      %30 = sbr.rel (0) target = $region13
    $region12: #{tpu_custom_call.1} parent=1 // pred_region
      %s32 = ssub.s32 128, 128
      %33 = vsyncadd [#allocation6], %s32
      %s34 = sshll.u32 [#allocation5], 4
      %s35 = int_to_ptr.vmem [resolvable:$true] %s34
      %40 = dma.hbm_to_vmem [thread:$0]  %s2, 128, %s35, [#allocation6], 64, 64, 4
    $region13: #{tpu_custom_call.1} parent=1 // pred_fallthru
      _
    // Predicated region
    $region14: #{tpu_custom_call.1} parent=1 // pred_check
      _
    $region15: #{tpu_custom_call.1} parent=1 // pred_check_branch
      %42 = sbr.rel (0) target = $region17
    $region16: #{tpu_custom_call.1} parent=1 // pred_region
      _
    $region17: #{tpu_custom_call.1} parent=1 // pred_fallthru
      _
    // Predicated region
    $region18: #{tpu_custom_call.1} parent=1 // pred_check
      _
    $region19: #{tpu_custom_call.1} parent=1 // pred_check_branch
      %44 = sbr.rel (0) target = $region21
    $region20: #{tpu_custom_call.1} parent=1 // pred_region
      _
    $region21: #{tpu_custom_call.1} parent=1 // pred_fallthru
      _
    // Predicated region
    $region22: #{tpu_custom_call.1} parent=1 // pred_check
      _
    $region23: #{tpu_custom_call.1} parent=1 // pred_check_branch
      %46 = sbr.rel (0) target = $region25
    $region24: #{tpu_custom_call.1} parent=1 // pred_region
      %s48 = ssub.s32 512, 512
      %49 = vsyncadd [#allocation6], %s48
      %s50 = sshll.u32 [#allocation7], 4
      %s51 = int_to_ptr.vmem [resolvable:$true] %s50
      %56 = dma.hbm_to_vmem [thread:$0]  %s5, 512, %s51, [#allocation6], 64, 64, 4
    $region25: #{tpu_custom_call.1} parent=1 // pred_fallthru
      _
    // Predicated region
    $region26: #{tpu_custom_call.1} parent=1 // pred_check
      _
    $region27: #{tpu_custom_call.1} parent=1 // pred_check_branch
      %58 = sbr.rel (0) target = $region29
    $region28: #{tpu_custom_call.1} parent=1 // pred_region
      _
    $region29: #{tpu_custom_call.1} parent=1 // pred_fallthru
      _
    // Predicated region
    $region30: #{tpu_custom_call.1} parent=1 // pred_check
      _
    $region31: #{tpu_custom_call.1} parent=1 // pred_check_branch
      %60 = sbr.rel (0) target = $region33
    $region32: #{tpu_custom_call.1} parent=1 // pred_region
      _
    $region33: #{tpu_custom_call.1} parent=1 // pred_fallthru
      _
    // Predicated region
    $region34: #{tpu_custom_call.1} parent=1 // pred_check
      _
    $region35: #{tpu_custom_call.1} parent=1 // pred_check_branch
      %62 = sbr.rel (0) target = $region37
    $region36: #{tpu_custom_call.1} parent=1 // pred_region
      _
    $region37: #{tpu_custom_call.1} parent=1 // pred_fallthru
      _
    // Predicated region
    $region38: #{tpu_custom_call.1} parent=1 // pred_check
      _
    $region39: #{tpu_custom_call.1} parent=1 // pred_check_branch
      %64 = sbr.rel (0) target = $region41
    $region40: #{tpu_custom_call.1} parent=1 // pred_region
      %65 = dma.done [#allocation3], 128
    $region41: #{tpu_custom_call.1} parent=1 // pred_fallthru
      _
    // Predicated region
    $region42: #{tpu_custom_call.1} parent=1 // pred_check
      _
    $region43: #{tpu_custom_call.1} parent=1 // pred_check_branch
      %67 = sbr.rel (0) target = $region45
    $region44: #{tpu_custom_call.1} parent=1 // pred_region
      %68 = dma.done [#allocation6], 128
    $region45: #{tpu_custom_call.1} parent=1 // pred_fallthru
      _
    // Predicated region
    $region46: #{tpu_custom_call.1} parent=1 // pred_check
      _
    $region47: #{tpu_custom_call.1} parent=1 // pred_check_branch
      %70 = sbr.rel (0) target = $region49
    $region48: #{tpu_custom_call.1} parent=1 // pred_region
      %71 = dma.done [#allocation6], 512
    $region49: #{tpu_custom_call.1} parent=1 // pred_fallthru
      _
    %v73 = vld [vmem:[#allocation2] sm:$0xff]
    %v74 = vpack.c.bf16 %v73, %v73
    %v75 = vld [vmem:[%s1] sm:$0xff]
    %v76 = vpack.c.bf16 %v75, %v75
    %v77 = vld [vmem:[#allocation5] sm:$0xf]
    %v78 = vld [vmem:[#allocation5 + $0x4] sm:$0xf]
    %v79 = vld [vmem:[%s3] sm:$0x3]
    %vm80 = vcmask 31744
    %v82 = vsel %vm80, %v76, 0
    %vm84 = vcmask 1041408
    %v86 = vsel %vm84, %v79, 0
    %88 = vmatprep.subr.bf16.mxu0 0
    %89 = vmatpush1.bf16.msra.mxu0 %v86
    %90 = vmatprep.subr.bf16.mxu0 0
    %91 = vmatpush1.bf16.msra.mxu0 0
    %92 = vmatprep.subr.bf16.mxu0 0
    %93 = vmatpush1.bf16.msra.mxu0 0
    %94 = vmatprep.subr.bf16.mxu0 0
    %95 = vmatpush1.bf16.msra.mxu0 0
    %96 = vmatprep.subr.bf16.mxu0 0
    %97 = vmatpush1.bf16.msra.mxu0 0
    %98 = vmatprep.subr.bf16.mxu0 0
    %99 = vmatpush1.bf16.msra.mxu0 0
    %100 = vmatprep.subr.bf16.mxu0 0
    %101 = vmatpush1.bf16.msra.mxu0 0
    %102 = vmatprep.subr.bf16.mxu0 0
    %103 = vmatpush1.bf16.msra.mxu0 0
    %104 = vmatprep.subr.bf16.mxu0 0
    %105 = vmatpush1.bf16.msra.mxu0 0
    %106 = vmatprep.subr.bf16.mxu0 0
    %107 = vmatpush1.bf16.msra.mxu0 0
    %108 = vmatprep.subr.bf16.mxu0 0
    %109 = vmatpush1.bf16.msra.mxu0 0
    %110 = vmatprep.subr.bf16.mxu0 0
    %111 = vmatpush1.bf16.msra.mxu0 0
    %112 = vmatprep.subr.bf16.mxu0 0
    %113 = vmatpush1.bf16.msra.mxu0 0
    %114 = vmatprep.subr.bf16.mxu0 0
    %115 = vmatpush1.bf16.msra.mxu0 0
    %116 = vmatprep.subr.bf16.mxu0 0
    %117 = vmatpush1.bf16.msra.mxu0 0
    %118 = vmatprep.subr.bf16.mxu0 0
    %119 = vmatpush1.bf16.msra.mxu0 0
    %120 = vmatprep.mubr.bf16.mxu0 0
    %121 = vmatmul.mubr.bf16.gmra.mrb[0].mxu0 %v82
    %v122 = vpop.f32.mrb[0].mxu0
    %v123 = vadd.f32 0.0, %v122
    %v124 = vpop.f32.mrb[0].mxu0
    %v125 = vpop.f32.mrb[0].mxu0
    %v126 = vpop.f32.mrb[0].mxu0
    %127 = vdwg.mxu0
    %v130 = vunpack.c.l.b16 %v77
    %v131 = vunpack.c.l.b16 %v78
    %v132 = vpack.c.b16 %v131, %v130
    %vm134 = vcmask 130048
    %v136 = vsel %vm134, %v74, 0
    %138 = vmatprep.subr.bf16.mxu0 0
    %139 = vmatpush1.bf16.msra.mxu0 %v132
    %140 = vmatprep.subr.bf16.mxu0 0
    %141 = vmatpush1.bf16.msra.mxu0 0
    %142 = vmatprep.subr.bf16.mxu0 0
    %143 = vmatpush1.bf16.msra.mxu0 0
    %144 = vmatprep.subr.bf16.mxu0 0
    %145 = vmatpush1.bf16.msra.mxu0 0
    %146 = vmatprep.subr.bf16.mxu0 0
    %147 = vmatpush1.bf16.msra.mxu0 0
    %148 = vmatprep.subr.bf16.mxu0 0
    %149 = vmatpush1.bf16.msra.mxu0 0
    %150 = vmatprep.subr.bf16.mxu0 0
    %151 = vmatpush1.bf16.msra.mxu0 0
    %152 = vmatprep.subr.bf16.mxu0 0
    %153 = vmatpush1.bf16.msra.mxu0 0
    %154 = vmatprep.subr.bf16.mxu0 0
    %155 = vmatpush1.bf16.msra.mxu0 0
    %156 = vmatprep.subr.bf16.mxu0 0
    %157 = vmatpush1.bf16.msra.mxu0 0
    %158 = vmatprep.subr.bf16.mxu0 0
    %159 = vmatpush1.bf16.msra.mxu0 0
    %160 = vmatprep.subr.bf16.mxu0 0
    %161 = vmatpush1.bf16.msra.mxu0 0
    %162 = vmatprep.subr.bf16.mxu0 0
    %163 = vmatpush1.bf16.msra.mxu0 0
    %164 = vmatprep.subr.bf16.mxu0 0
    %165 = vmatpush1.bf16.msra.mxu0 0
    %166 = vmatprep.subr.bf16.mxu0 0
    %167 = vmatpush1.bf16.msra.mxu0 0
    %168 = vmatprep.subr.bf16.mxu0 0
    %169 = vmatpush1.bf16.msra.mxu0 0
    %170 = vmatprep.mubr.bf16.mxu0 0
    %171 = vmatmul.mubr.bf16.gmra.mrb[0].mxu0 %v136
    %v172 = vpop.f32.mrb[0].mxu0
    %v173 = vadd.f32 %v123, %v172
    %v174 = vpop.f32.mrb[0].mxu0
    %v175 = vpop.f32.mrb[0].mxu0
    %v176 = vpop.f32.mrb[0].mxu0
    %177 = vdwg.mxu0
    %v178 = vld [vmem:[%s4] sm:$0x1]
    %v180 = vlaneseq
    %v181 = vshrl.u32 %v180, 7
    %v182 = vsub.s32 0, %v181
    %v183 = vrot.slane %v178, %v182
    %v185 = vadd.f32 %v173, %v183
    %v186 = vmax.f32 %v185, 0.0
    %v187 = vpack.c.bf16 %v186, %v186
    %v188 = vld [vmem:[#allocation7] sm:$0xf]
    %v189 = vld [vmem:[#allocation7 + $0x4] sm:$0xf]
    %v190 = vld [vmem:[#allocation7 + $0x8] sm:$0xf]
    %v191 = vld [vmem:[#allocation7 + $0xc] sm:$0xf]
    %v192 = vld [vmem:[#allocation7 + $0x10] sm:$0xf]
    %v193 = vld [vmem:[#allocation7 + $0x14] sm:$0xf]
    %v194 = vld [vmem:[#allocation7 + $0x18] sm:$0xf]
    %v195 = vld [vmem:[#allocation7 + $0x1c] sm:$0xf]
    %v196 = vld [vmem:[%s6] sm:$0x1]
    %v198 = vlaneseq
    %v199 = vshrl.u32 %v198, 7
    %v200 = vsub.s32 0, %v199
    %v201 = vrot.slane %v196, %v200
    %v211 = vunpack.c.l.b16 %v188
    %v212 = vunpack.c.l.b16 %v189
    %v213 = vunpack.c.l.b16 %v190
    %v214 = vunpack.c.l.b16 %v191
    %v215 = vunpack.c.l.b16 %v192
    %v216 = vunpack.c.l.b16 %v193
    %v217 = vunpack.c.l.b16 %v194
    %v218 = vunpack.c.l.b16 %v195
    %v219 = vpack.c.b16 %v212, %v211
    %v220 = vpack.c.b16 %v214, %v213
    %v221 = vpack.c.b16 %v216, %v215
    %v222 = vpack.c.b16 %v218, %v217
    %vm227 = vcmask 523264
    %v229 = vsel %vm227, %v187, 0
    %231 = vmatprep.subr.bf16.mxu0 0
    %232 = vmatpush1.bf16.msra.mxu0 %v219
    %233 = vmatprep.subr.bf16.mxu0 0
    %234 = vmatpush1.bf16.msra.mxu0 %v220
    %235 = vmatprep.subr.bf16.mxu0 0
    %236 = vmatpush1.bf16.msra.mxu0 %v221
    %237 = vmatprep.subr.bf16.mxu0 0
    %238 = vmatpush1.bf16.msra.mxu0 %v222
    %239 = vmatprep.subr.bf16.mxu0 0
    %240 = vmatpush1.bf16.msra.mxu0 0
    %241 = vmatprep.subr.bf16.mxu0 0
    %242 = vmatpush1.bf16.msra.mxu0 0
    %243 = vmatprep.subr.bf16.mxu0 0
    %244 = vmatpush1.bf16.msra.mxu0 0
    %245 = vmatprep.subr.bf16.mxu0 0
    %246 = vmatpush1.bf16.msra.mxu0 0
    %247 = vmatprep.subr.bf16.mxu0 0
    %248 = vmatpush1.bf16.msra.mxu0 0
    %249 = vmatprep.subr.bf16.mxu0 0
    %250 = vmatpush1.bf16.msra.mxu0 0
    %251 = vmatprep.subr.bf16.mxu0 0
    %252 = vmatpush1.bf16.msra.mxu0 0
    %253 = vmatprep.subr.bf16.mxu0 0
    %254 = vmatpush1.bf16.msra.mxu0 0
    %255 = vmatprep.subr.bf16.mxu0 0
    %256 = vmatpush1.bf16.msra.mxu0 0
    %257 = vmatprep.subr.bf16.mxu0 0
    %258 = vmatpush1.bf16.msra.mxu0 0
    %259 = vmatprep.subr.bf16.mxu0 0
    %260 = vmatpush1.bf16.msra.mxu0 0
    %261 = vmatprep.subr.bf16.mxu0 0
    %262 = vmatpush1.bf16.msra.mxu0 0
    %263 = vmatprep.mubr.bf16.mxu0 0
    %264 = vmatmul.mubr.bf16.gmra.mrb[0].mxu0 %v229
    %v265 = vpop.f32.mrb[0].mxu0
    %v266 = vadd.f32 %v201, %v265
    %v267 = vpop.f32.mrb[0].mxu0
    %v268 = vpop.f32.mrb[0].mxu0
    %v269 = vpop.f32.mrb[0].mxu0
    %270 = vdwg.mxu0
    %v271 = vmax.f32 %v266, 0.0
    %v272 = vpack.c.bf16 %v271, %v271
    %v273 = vld [vmem:[%s7] sm:$0xf]
    %v274 = vld [vmem:[%s7 + $0x4] sm:$0xf]
    %v275 = vld [vmem:[%s7 + $0x8] sm:$0xf]
    %v276 = vld [vmem:[%s7 + $0xc] sm:$0xf]
    %v277 = vld [vmem:[%s7 + $0x10] sm:$0xf]
    %v278 = vld [vmem:[%s7 + $0x14] sm:$0xf]
    %v279 = vld [vmem:[%s7 + $0x18] sm:$0xf]
    %v280 = vld [vmem:[%s7 + $0x1c] sm:$0xf]
    %v281 = vld [vmem:[%s8] sm:$0x1]
    %v283 = vlaneseq
    %v284 = vshrl.u32 %v283, 7
    %v285 = vsub.s32 0, %v284
    %v286 = vrot.slane %v281, %v285
    %v296 = vunpack.c.l.b16 %v273
    %v297 = vunpack.c.l.b16 %v274
    %v298 = vunpack.c.l.b16 %v275
    %v299 = vunpack.c.l.b16 %v276
    %v300 = vunpack.c.l.b16 %v277
    %v301 = vunpack.c.l.b16 %v278
    %v302 = vunpack.c.l.b16 %v279
    %v303 = vunpack.c.l.b16 %v280
    %v304 = vpack.c.b16 %v297, %v296
    %v305 = vpack.c.b16 %v299, %v298
    %v306 = vpack.c.b16 %v301, %v300
    %v307 = vpack.c.b16 %v303, %v302
    %v313 = vsel %vm227, %v272, 0
    %315 = vmatprep.subr.bf16.mxu0 0
    %316 = vmatpush1.bf16.msra.mxu0 %v304
    %317 = vmatprep.subr.bf16.mxu0 0
    %318 = vmatpush1.bf16.msra.mxu0 %v305
    %319 = vmatprep.subr.bf16.mxu0 0
    %320 = vmatpush1.bf16.msra.mxu0 %v306
    %321 = vmatprep.subr.bf16.mxu0 0
    %322 = vmatpush1.bf16.msra.mxu0 %v307
    %323 = vmatprep.subr.bf16.mxu0 0
    %324 = vmatpush1.bf16.msra.mxu0 0
    %325 = vmatprep.subr.bf16.mxu0 0
    %326 = vmatpush1.bf16.msra.mxu0 0
    %327 = vmatprep.subr.bf16.mxu0 0
    %328 = vmatpush1.bf16.msra.mxu0 0
    %329 = vmatprep.subr.bf16.mxu0 0
    %330 = vmatpush1.bf16.msra.mxu0 0
    %331 = vmatprep.subr.bf16.mxu0 0
    %332 = vmatpush1.bf16.msra.mxu0 0
    %333 = vmatprep.subr.bf16.mxu0 0
    %334 = vmatpush1.bf16.msra.mxu0 0
    %335 = vmatprep.subr.bf16.mxu0 0
    %336 = vmatpush1.bf16.msra.mxu0 0
    %337 = vmatprep.subr.bf16.mxu0 0
    %338 = vmatpush1.bf16.msra.mxu0 0
    %339 = vmatprep.subr.bf16.mxu0 0
    %340 = vmatpush1.bf16.msra.mxu0 0
    %341 = vmatprep.subr.bf16.mxu0 0
    %342 = vmatpush1.bf16.msra.mxu0 0
    %343 = vmatprep.subr.bf16.mxu0 0
    %344 = vmatpush1.bf16.msra.mxu0 0
    %345 = vmatprep.subr.bf16.mxu0 0
    %346 = vmatpush1.bf16.msra.mxu0 0
    %347 = vmatprep.mubr.bf16.mxu0 0
    %348 = vmatmul.mubr.bf16.gmra.mrb[0].mxu0 %v313
    %v349 = vpop.f32.mrb[0].mxu0
    %v350 = vadd.f32 %v286, %v349
    %v351 = vpop.f32.mrb[0].mxu0
    %v352 = vpop.f32.mrb[0].mxu0
    %v353 = vpop.f32.mrb[0].mxu0
    %354 = vdwg.mxu0
    %v355 = vpack.c.bf16 %v350, %v350
    %356 = vst [vmem:[#allocation8] sm:$0xf] %v355
    // Predicated region
    $region50: #{tpu_custom_call.1} parent=1 // pred_check
      _
    $region51: #{tpu_custom_call.1} parent=1 // pred_check_branch
      %358 = sbr.rel (0) target = $region53
    $region52: #{tpu_custom_call.1} parent=1 // pred_region
      %s360 = ssub.s32 64, 64
      %361 = vsyncadd [#allocation4], %s360
      %s363 = sshll.u32 [#allocation8], 4
      %s364 = int_to_ptr.vmem [resolvable:$true] %s363
      %366 = dma.vmem_to_hbm [thread:$0]  %s364, 64, %s9, [#allocation4]
    $region53: #{tpu_custom_call.1} parent=1 // pred_fallthru
      _
    // Predicated region
    $region54: #{tpu_custom_call.1} parent=1 // pred_check
      _
    $region55: #{tpu_custom_call.1} parent=1 // pred_check_branch
      %368 = sbr.rel (0) target = $region57
    $region56: #{tpu_custom_call.1} parent=1 // pred_region
      %369 = dma.done [#allocation4], 64
    $region57: #{tpu_custom_call.1} parent=1 // pred_fallthru
      _
    %370 = vsyncpa [#allocation3], 1
    %371 = vsyncpa [#allocation6], 1
    %372 = vsyncpa [#allocation4], 1

</llo_original>
